<compile_context>
chip_gen: v7x
topology: tpu7x:2x2x1
jax: 0.10.0
libtpu: 0.0.40
codegen_flags: <defaults>
</compile_context>

<pallas_src>
import functools

import jax
import jax.numpy as jnp
from jax import lax
from jax.experimental import pallas as pl
from jax.experimental.pallas import tpu as pltpu


def _fixed_gaussian_kernel(*refs, sigma, diag, norm, has_cmask, row_tile, col_tile):
    # refs layout (has_cmask=True):  lhs, rhs, sqn_c, cmask, adj
    #             (has_cmask=False): lhs, rhs, sqn_c, adj
    if has_cmask:
        lhs_ref, rhs_ref, sqn_c_ref, cmask_ref, adj_ref = refs
    else:
        lhs_ref, rhs_ref, sqn_c_ref, adj_ref = refs
        cmask_ref = None

    lhs = lhs_ref[0]                                   # (TI, F_pad)   native dtype
    rhs = rhs_ref[0]                                   # (F_pad, TC)   native dtype

    # Gram tile on the MXU, f32 accumulation.
    gram = jnp.dot(lhs, rhs, preferred_element_type=jnp.float32)   # (TI, TC)

    # Row squared norms computed in-kernel from the LHS strip (XLU reduce, off the
    # binding slot); column squared norms arrive precomputed from the wrapper.
    lhs_f32 = lhs.astype(jnp.float32)
    sqn_r = jnp.sum(lhs_f32 * lhs_f32, axis=1, keepdims=True)       # (TI, 1)

    sqdist = sqn_r + sqn_c_ref[0] - 2.0 * gram                      # (TI, TC)
    # Intentional deviation: clamp fp-cancellation noise (diagonal becomes exactly exp(0)=1).
    sqdist = jnp.maximum(sqdist, 0.0)

    adj = jnp.exp(sqdist * (-(sigma * sigma)))                      # (TI, TC)

    if not diag:
        # _delete_diag: zero diagonal entries of this (row, col) tile.
        row_off = pl.program_id(1) * row_tile
        col_off = pl.program_id(2) * col_tile
        row = row_off + lax.broadcasted_iota(jnp.int32, (row_tile, 1), 0)
        col = col_off + lax.broadcasted_iota(jnp.int32, (row_tile, col_tile), 1)
        adj = jnp.where(col != row, adj, 0.0)

    if cmask_ref is not None:
        # Zero padded columns with one VPU multiply (exact for any sigma, incl. sigma=0).
        adj = adj * cmask_ref[0]

    if norm:
        # _stochastich: row-stochastic normalization. Matches the module: no eps guard, a
        # fully-zero row divides by zero exactly like the PyTorch reference.
        deg = jnp.sum(adj, axis=1, keepdims=True)                   # (TI, 1)
        adj = adj * pl.reciprocal(deg, approx=False)

    # TODO(synk): on v7x with out_dtype=bf16 the mask/norm math could run packed-bf16 to
    # halve VPU cycles; kept f32 here for accuracy and v5e friendliness (cast only at store).
    adj_ref[0] = adj.astype(adj_ref.dtype)


def _round_up(x, m):
    return ((x + m - 1) // m) * m


def _div_candidates(n_pad, cap=None):
    """Multiples of 128 that divide n_pad, descending (optionally capped)."""
    m = n_pad // 128
    cands = sorted({128 * d for d in range(1, m + 1) if m % d == 0}, reverse=True)
    if cap is not None:
        capped = [c for c in cands if c <= cap]
        cands = capped if capped else [min(cands)]
    return cands


def _vmem_capacity_bytes():
    try:
        info = pltpu.get_tpu_info()
        cap = int(getattr(info, "vmem_capacity_bytes", 0) or 0)
        if cap > 0:
            return cap
    except Exception:
        pass
    return 64 << 20  # conservative fallback = v7x per-TensorCore VMEM


def _footprint_bytes(ti, tc, f_pad, in_bytes, out_bytes):
    """Double-buffered pipeline footprint + f32 intermediates for one grid step."""
    out_buf = 2 * ti * tc * out_bytes        # output blocks (double-buffered)
    rhs_buf = 2 * f_pad * tc * in_bytes      # emb (F_pad, TC) column strip
    lhs_buf = 2 * ti * f_pad * in_bytes      # emb^T (TI, F_pad) row strip
    sqn_buf = 2 * 8 * tc * 4                 # (1, TC) column norms (sublane-padded to 8)
    msk_buf = 2 * 8 * tc * 4                 # optional (1, TC) column mask
    interm = 2 * ti * tc * 4                 # gram / adj f32 temporaries
    return out_buf + rhs_buf + lhs_buf + sqn_buf + msk_buf + interm


def _select_tiles(n_pad, f_pad, batch, in_bytes, out_bytes, norm, vmem_cap):
    budget = vmem_cap // 2                   # leave half of physical VMEM as headroom
    ti_cands = _div_candidates(n_pad, cap=1024)
    tc_cands = [n_pad] if norm else _div_candidates(n_pad)

    choice = None
    for tc in tc_cands:                      # prefer full-width (lane-dense) columns
        for ti in ti_cands:                  # then the largest row tile that fits
            if _footprint_bytes(ti, tc, f_pad, in_bytes, out_bytes) <= budget:
                choice = (ti, tc)
                break
        if choice is not None:
            break
    if choice is None:
        # TODO(synk): very large graphs with norm=True need a two-pass (deg, then adj)
        # scheme; fall back to the smallest tile and let vmem_limit_bytes absorb it.
        choice = (128, n_pad if norm else 128)
    ti, tc = choice

    # Keep >=2 parallel grid tiles so both v7x TensorCores get work for small batches.
    if batch * (n_pad // ti) * (n_pad // tc) < 2:
        smaller = [c for c in ti_cands if c < ti]
        if smaller:
            ti = smaller[0]
    return ti, tc


def fixed_gaussian(emb, sigma, diag=True, norm=False, periodic=False,
                   out_dtype=None, full_output=False):
    """Pallas implementation of FixedGaussian.forward.

    emb: (B, F, N) float array (f32 or bf16). Returns adjacency (B, N, N).
    out_dtype: optional output dtype. bf16 is recommended for small F (writeback-bound
               regime) — halves HBM traffic; default emb.dtype preserves full accuracy.
    full_output: if True and N was padded to a multiple of 128, return the padded
               (B, n_pad, n_pad) array (padded cols are zero) and skip the slice copy.
    """
    if periodic:
        # TODO(synk): periodic sqdist (ts.sqdist_periodic_) not implemented; only the
        # standard Euclidean sqdist_ path is provided.
        raise NotImplementedError("periodic sqdist not implemented")

    B, F, N = emb.shape
    out_dtype = jnp.dtype(emb.dtype if out_dtype is None else out_dtype)

    # Pad node axis to a multiple of 128 (lane-dense stores) and the feature axis for
    # clean sublane/lane layouts (exact for the Gram matrix since padding is zeros).
    n_pad = max(128, _round_up(N, 128))
    f_pad = _round_up(F, 8) if F <= 128 else _round_up(F, 128)
    if n_pad != N or f_pad != F:
        emb_p = jnp.pad(emb, ((0, 0), (0, f_pad - F), (0, n_pad - N)))
    else:
        emb_p = emb

    emb_t = jnp.swapaxes(emb_p, 1, 2)                                         # (B, n_pad, f_pad)
    sqn_c = jnp.sum(jnp.square(emb_p.astype(jnp.float32)), axis=1,
                    keepdims=True)                                            # (B, 1, n_pad)

    in_bytes = emb.dtype.itemsize
    out_bytes = out_dtype.itemsize
    vmem_cap = _vmem_capacity_bytes()
    ti, tc = _select_tiles(n_pad, f_pad, B, in_bytes, out_bytes, norm, vmem_cap)

    footprint = _footprint_bytes(ti, tc, f_pad, in_bytes, out_bytes)
    vmem_limit = int(min(vmem_cap - (4 << 20),
                         max(32 << 20, footprint + (16 << 20))))

    has_cmask = n_pad != N
    kernel = functools.partial(
        _fixed_gaussian_kernel,
        sigma=float(sigma), diag=bool(diag), norm=bool(norm),
        has_cmask=has_cmask, row_tile=ti, col_tile=tc,
    )

    in_specs = [
        pl.BlockSpec((1, ti, f_pad), lambda b, i, c: (b, i, 0)),    # emb^T row strip (MXU LHS)
        pl.BlockSpec((1, f_pad, tc), lambda b, i, c: (b, 0, c)),    # emb column strip (MXU RHS)
        pl.BlockSpec((1, 1, tc), lambda b, i, c: (b, 0, c)),        # column squared norms
    ]
    args = [emb_t, emb_p, sqn_c]
    if has_cmask:
        cmask = (jnp.arange(n_pad, dtype=jnp.int32) < N).astype(jnp.float32)
        args.append(cmask.reshape(1, 1, n_pad))
        in_specs.append(pl.BlockSpec((1, 1, tc), lambda b, i, c: (0, 0, c)))

    grid = (B, n_pad // ti, n_pad // tc)
    adj_p = pl.pallas_call(
        kernel,
        out_shape=jax.ShapeDtypeStruct((B, n_pad, n_pad), out_dtype),
        grid=grid,
        in_specs=in_specs,
        out_specs=pl.BlockSpec((1, ti, tc), lambda b, i, c: (b, i, c)),
        compiler_params=pltpu.CompilerParams(
            dimension_semantics=("parallel", "parallel", "parallel"),
            vmem_limit_bytes=vmem_limit),
    )(*args)

    if has_cmask and not full_output:
        adj_p = adj_p[:, :N, :N]
    return adj_p


def _reference(emb, sigma, diag=True, norm=False):
    e = emb.astype(jnp.float32)                                  # (B, F, N)
    gram = jnp.einsum("bfi,bfj->bij", e, e)                      # (B, N, N)
    sqnorm = jnp.sum(e * e, axis=1)                              # (B, N)
    sqdist = sqnorm[:, :, None] + sqnorm[:, None, :] - 2.0 * gram
    adj = jnp.exp(-sqdist * sigma * sigma)
    if not diag:
        n = adj.shape[1]
        adj = adj * (1.0 - jnp.eye(n, dtype=adj.dtype))[None]
    if norm:
        adj = adj / jnp.sum(adj, axis=2, keepdims=True)
    return adj


if __name__ == "__main__":
    key = jax.random.PRNGKey(0)
    B, F, N = 2, 4, 16
    emb = jax.random.normal(key, (B, F, N), dtype=jnp.float32)
    sigma = 0.7

    # Module defaults: diag=True (keep diagonal), norm=False (no row norm).
    out = jax.block_until_ready(fixed_gaussian(emb, sigma, diag=True, norm=False))
    ref = _reference(emb, sigma, diag=True, norm=False)
    assert out.shape == (B, N, N)
    assert jnp.allclose(out, ref, atol=1e-5, rtol=1e-5)

    # Non-default branches: diag deletion + row-stochastic normalization.
    out2 = jax.block_until_ready(fixed_gaussian(emb, sigma, diag=False, norm=True))
    ref2 = _reference(emb, sigma, diag=False, norm=True)
    assert jnp.allclose(out2, ref2, atol=1e-5, rtol=1e-5)

    # Lane-aligned N exercises the no-column-mask path (n_pad == N), B=1 grid balancing.
    emb3 = jax.random.normal(jax.random.PRNGKey(1), (1, 8, 128), dtype=jnp.float32)
    out3 = jax.block_until_ready(fixed_gaussian(emb3, sigma, diag=False, norm=True))
    ref3 = _reference(emb3, sigma, diag=False, norm=True)
    assert jnp.allclose(out3, ref3, atol=1e-5, rtol=1e-5)

    # Opt-in bf16 adjacency (recommended when F is small and the kernel is writeback-bound).
    out4 = jax.block_until_ready(fixed_gaussian(emb, sigma, out_dtype=jnp.bfloat16))
    assert jnp.allclose(out4.astype(jnp.float32), ref, atol=2e-2, rtol=2e-2)

    print("KERNEL_OK")
</pallas_src>

<mosaic_0001>
module attributes {stable_mosaic.version = 11 : i64} {
  func.func @_fixed_gaussian_kernel(%arg0: i32, %arg1: i32, %arg2: i32, %arg3: memref<1x128x8xf32, #tpu.memory_space<vmem>>, %arg4: memref<1x8x128xf32, #tpu.memory_space<vmem>>, %arg5: memref<1x1x128xf32, #tpu.memory_space<vmem>>, %arg6: memref<1x1x128xf32, #tpu.memory_space<vmem>>, %arg7: memref<1x128x128xf32, #tpu.memory_space<vmem>>) attributes {dimension_semantics = [#tpu.dimension_semantics<parallel>, #tpu.dimension_semantics<parallel>, #tpu.dimension_semantics<parallel>], iteration_bounds = array<i64: 2, 1, 1>, scalar_prefetch = 0 : i64, scratch_operands = 0 : i64, tpu.core_type = #tpu.core_type<tc>, window_params = [{transform_indices = @transform_0, window_bounds = array<i64: 1, 128, 8>}, {transform_indices = @transform_1, window_bounds = array<i64: 1, 8, 128>}, {transform_indices = @transform_2, window_bounds = array<i64: 1, 1, 128>}, {transform_indices = @transform_3, window_bounds = array<i64: 1, 1, 128>}, {transform_indices = @transform_4, window_bounds = array<i64: 1, 128, 128>}]} {
    %c0 = arith.constant 0 : index
    %c0_0 = arith.constant 0 : index
    %c0_1 = arith.constant 0 : index
    %0 = vector.load %arg3[%c0, %c0_0, %c0_1] : memref<1x128x8xf32, #tpu.memory_space<vmem>>, vector<1x128x8xf32>
    %1 = vector.shape_cast %0 : vector<1x128x8xf32> to vector<128x8xf32>
    %c0_2 = arith.constant 0 : index
    %c0_3 = arith.constant 0 : index
    %c0_4 = arith.constant 0 : index
    %2 = vector.load %arg4[%c0_2, %c0_3, %c0_4] : memref<1x8x128xf32, #tpu.memory_space<vmem>>, vector<1x8x128xf32>
    %3 = vector.shape_cast %2 : vector<1x8x128xf32> to vector<8x128xf32>
    %cst = arith.constant dense<0.000000e+00> : vector<128x128xf32>
    %4 = tpu.matmul %1, %3, %cst {dimension_numbers = #tpu.dot_dimension_numbers<[1], [0], [0], [1], [0, 0, 1, 1], [], []>} : vector<128x8xf32>, vector<8x128xf32>, vector<128x128xf32> -> vector<128x128xf32>
    %5 = arith.mulf %1, %1 : vector<128x8xf32>
    %cst_5 = arith.constant dense<0.000000e+00> : vector<128xf32>
    %6 = vector.multi_reduction <add>, %5, %cst_5 [1] : vector<128x8xf32> to vector<128xf32>
    %7 = vector.shape_cast %6 : vector<128xf32> to vector<128x1xf32>
    %c0_6 = arith.constant 0 : index
    %c0_7 = arith.constant 0 : index
    %c0_8 = arith.constant 0 : index
    %8 = vector.load %arg5[%c0_6, %c0_7, %c0_8] : memref<1x1x128xf32, #tpu.memory_space<vmem>>, vector<1x1x128xf32>
    %9 = vector.shape_cast %8 : vector<1x1x128xf32> to vector<1x128xf32>
    %10 = vector.broadcast %7 : vector<128x1xf32> to vector<128x128xf32>
    %11 = vector.broadcast %9 : vector<1x128xf32> to vector<128x128xf32>
    %12 = arith.addf %10, %11 : vector<128x128xf32>
    %cst_9 = arith.constant 2.000000e+00 : f32
    %13 = vector.broadcast %cst_9 : f32 to vector<128x128xf32>
    %14 = arith.mulf %13, %4 : vector<128x128xf32>
    %15 = arith.subf %12, %14 : vector<128x128xf32>
    %cst_10 = arith.constant 0.000000e+00 : f32
    %16 = vector.broadcast %cst_10 : f32 to vector<128x128xf32>
    %17 = arith.maximumf %15, %16 : vector<128x128xf32>
    %cst_11 = arith.constant -4.900000e-01 : f32
    %18 = vector.broadcast %cst_11 : f32 to vector<128x128xf32>
    %19 = arith.mulf %17, %18 : vector<128x128xf32>
    %20 = math.exp %19 : vector<128x128xf32>
    %c0_12 = arith.constant 0 : index
    %c0_13 = arith.constant 0 : index
    %c0_14 = arith.constant 0 : index
    %21 = vector.load %arg6[%c0_12, %c0_13, %c0_14] : memref<1x1x128xf32, #tpu.memory_space<vmem>>, vector<1x1x128xf32>
    %22 = vector.shape_cast %21 : vector<1x1x128xf32> to vector<1x128xf32>
    %23 = vector.broadcast %22 : vector<1x128xf32> to vector<128x128xf32>
    %24 = arith.mulf %20, %23 : vector<128x128xf32>
    %c0_15 = arith.constant 0 : index
    %c0_16 = arith.constant 0 : index
    %c0_17 = arith.constant 0 : index
    %25 = vector.load %arg7[%c0_15, %c0_16, %c0_17] : memref<1x128x128xf32, #tpu.memory_space<vmem>>, vector<1x128x128xf32>
    %26 = vector.shape_cast %25 : vector<1x128x128xf32> to vector<128x128xf32>
    %27 = vector.shape_cast %24 : vector<128x128xf32> to vector<1x128x128xf32>
    tpu.vector_store %arg7[%c0_15, %c0_16, %c0_17], %27 {strides = array<i32>} : memref<1x128x128xf32, #tpu.memory_space<vmem>>, vector<1x128x128xf32>,
    return
  }
  func.func @transform_0(%arg0: i32, %arg1: i32, %arg2: i32) -> (i32, i32, i32) {
    %c0_i32 = arith.constant 0 : i32
    %c0_i32_0 = arith.constant 0 : i32
    return %arg0, %arg1, %c0_i32 : i32, i32, i32
  }
  func.func @transform_1(%arg0: i32, %arg1: i32, %arg2: i32) -> (i32, i32, i32) {
    %c0_i32 = arith.constant 0 : i32
    %c0_i32_0 = arith.constant 0 : i32
    return %arg0, %c0_i32, %arg2 : i32, i32, i32
  }
  func.func @transform_2(%arg0: i32, %arg1: i32, %arg2: i32) -> (i32, i32, i32) {
    %c0_i32 = arith.constant 0 : i32
    %c0_i32_0 = arith.constant 0 : i32
    return %arg0, %c0_i32, %arg2 : i32, i32, i32
  }
  func.func @transform_3(%arg0: i32, %arg1: i32, %arg2: i32) -> (i32, i32, i32) {
    %c0_i32 = arith.constant 0 : i32
    %c0_i32_0 = arith.constant 0 : i32
    %c0_i32_1 = arith.constant 0 : i32
    return %c0_i32, %c0_i32_0, %arg2 : i32, i32, i32
  }
  func.func @transform_4(%arg0: i32, %arg1: i32, %arg2: i32) -> (i32, i32, i32) {
    %c0_i32 = arith.constant 0 : i32
    return %arg0, %arg1, %arg2 : i32, i32, i32
  }
}

</mosaic_0001>

<llo_original>
// kernel: tpu_custom_call.1
$region0: #{tpu_custom_call.1}
  #allocation0 [shape = 'u32[]', space=smem, size = 0x4, offset = 0x4, fixed_abs, tag = 'smem constant byte address 0x4 - core index']
  #allocation1 [shape = 'u32[144,128]{1,0:T(1,128)}', space=vmem, size = 0x12000, scoped, tag = 'internal scratch']
  %s0 = inlined_call_operand.vmem [shape: f32[2,128,8], index: 0, kind: input, shape index: {}]
  %s1 = inlined_call_operand.vmem [shape: f32[2,8,128], index: 1, kind: input, shape index: {}]
  %s2 = inlined_call_operand.vmem [shape: f32[2,1,128], index: 2, kind: input, shape index: {}]
  %s3 = inlined_call_operand.vmem [shape: f32[1,1,128], index: 3, kind: input, shape index: {}]
  %s4 = inlined_call_operand.hbm [shape: f32[2,128,128], index: 4, kind: output, shape index: {}]
  %s5 = sld [smem:[#allocation0]]
  $region49: #{tpu_custom_call.1} parent=0
    _
  %s7 = ssub.s32 1, %s5
  %s8 = scalar_select 0, %s7, %s5
  $region1: #{tpu_custom_call.1} parent=0
    #allocation2 [shape = 'u8[131072]{0}', space=vmem, size = 0x20000, scoped, tag = 'output window, operand 0']
    #allocation3 [shape = 's32[2]{0}', space=sflag, size = 0x8, scoped, tag = 'scoped memory for tpu_custom_call.1']
    %9 = vsyncpa [#allocation3], 0
    %s10 = scalar_lea.sflag [#allocation3], 1
    %11 = vsyncpa %s10, 0
    loop: start=0, step=1, limit=4
    $region2: #{tpu_custom_call.1} parent=1 // loop_pre_header
      _
    $region3: #{tpu_custom_call.1} parent=1 // loop_header
      %s13 = sphi 0, %s17
      %p14 = scmp.ge.s32.totalorder %s13, 4
      %s20 = sphi 0, %s39
      %s21 = sphi 0, %s35
      %s22 = sphi 0, %s31
      %s23 = sphi 0, %s20
      %s24 = sphi 0, %s21
      %s25 = sphi 0, %s22
      %s26 = sphi 0, %s23
      %s27 = sphi 0, %s24
      %s28 = sphi 0, %s25
      %s44 = sphi 0, %s46
      %s47 = sphi 0, %s44
      %s48 = sphi 0, %s47
      %s64 = sphi 0, %s48
      %s72 = sphi 0, %s74
      %s75 = sphi 0, %s72
      %s76 = sphi 0, %s75
      %s92 = sphi 0, %s76
      %s100 = sphi 0, %s102
      %s103 = sphi 0, %s100
      %s104 = sphi 0, %s103
      %s120 = sphi 0, %s104
      %s126 = sphi 0, %s128
      %s129 = sphi 0, %s126
      %s130 = sphi 0, %s129
      %s146 = sphi 0, %s130
      %s156 = sphi 0, %s158
      %s159 = sphi 0, %s156
      %s160 = sphi 0, %s159
      %s176 = sphi 0, %s160
    $region4: #{tpu_custom_call.1} parent=1 // loop_header_branch
      %16 = sbr.rel (%p14) target = $region8
    $region5: #{tpu_custom_call.1} parent=1 // loop_body
      %s18 = ssub.s32 %s13, 1
      %s19 = ssub.s32 %s13, 2
      %s29 = sadd.s32 1, %s22
      %p30 = scmp.ge.s32.totalorder %s29, 1
      %s31 = scalar_select %p30, 0, %s29
      %s32 = sadd.s32 1, %s21
      %s33 = scalar_select %p30, %s32, %s21
      %p34 = scmp.ge.s32.totalorder %s33, 1
      %s35 = scalar_select %p34, 0, %s33
      %s36 = sadd.s32 1, %s20
      %s37 = scalar_select %p34, %s36, %s20
      %p38 = scmp.ge.s32.totalorder %s37, 2
      %s39 = scalar_select %p38, 0, %s37
      %s40 = ssub.s32 %s20, %s39
      %s41 = ssub.s32 %s21, %s35
      %s42 = sor.u32 %s40, %s41
      %p43 = scmp.eq.s32.totalorder %s42, 0
      %s45 = sadd.s32 %s44, 1
      %s46 = scalar_select %p43, %s44, %s45
      %p49 = pneg %p43
      %p50 = scmp.eq.s32.totalorder %s13, 1
      %p51 = por %p49, %p50
      %p52 = scmp.ne.s32.totalorder %s44, %s47
      %p53 = scmp.eq.s32.totalorder %s13, 0
      %p54 = por %p52, %p53
      %p55 = scmp.ne.s32.totalorder %s44, %s47
      %p56 = scmp.eq.s32.totalorder %s18, 1
      %p57 = por %p55, %p56
      %p58 = scmp.ne.s32.totalorder %s47, %s48
      %p59 = scmp.eq.s32.totalorder %s18, 0
      %p60 = por %p58, %p59
      %p61 = scmp.ne.s32.totalorder %s47, %s48
      %p62 = scmp.eq.s32.totalorder %s19, 1
      %p63 = por %p61, %p62
      %p65 = scmp.ne.s32.totalorder %s48, %s64
      %p66 = scmp.eq.s32.totalorder %s19, 0
      %p67 = por %p65, %p66
      %s68 = ssub.s32 %s20, %s39
      %s69 = ssub.s32 %s22, %s31
      %s70 = sor.u32 %s68, %s69
      %p71 = scmp.eq.s32.totalorder %s70, 0
      %s73 = sadd.s32 %s72, 1
      %s74 = scalar_select %p71, %s72, %s73
      %p77 = pneg %p71
      %p78 = scmp.eq.s32.totalorder %s13, 1
      %p79 = por %p77, %p78
      %p80 = scmp.ne.s32.totalorder %s72, %s75
      %p81 = scmp.eq.s32.totalorder %s13, 0
      %p82 = por %p80, %p81
      %p83 = scmp.ne.s32.totalorder %s72, %s75
      %p84 = scmp.eq.s32.totalorder %s18, 1
      %p85 = por %p83, %p84
      %p86 = scmp.ne.s32.totalorder %s75, %s76
      %p87 = scmp.eq.s32.totalorder %s18, 0
      %p88 = por %p86, %p87
      %p89 = scmp.ne.s32.totalorder %s75, %s76
      %p90 = scmp.eq.s32.totalorder %s19, 1
      %p91 = por %p89, %p90
      %p93 = scmp.ne.s32.totalorder %s76, %s92
      %p94 = scmp.eq.s32.totalorder %s19, 0
      %p95 = por %p93, %p94
      %s96 = ssub.s32 %s20, %s39
      %s97 = ssub.s32 %s22, %s31
      %s98 = sor.u32 %s96, %s97
      %p99 = scmp.eq.s32.totalorder %s98, 0
      %s101 = sadd.s32 %s100, 1
      %s102 = scalar_select %p99, %s100, %s101
      %p105 = pneg %p99
      %p106 = scmp.eq.s32.totalorder %s13, 1
      %p107 = por %p105, %p106
      %p108 = scmp.ne.s32.totalorder %s100, %s103
      %p109 = scmp.eq.s32.totalorder %s13, 0
      %p110 = por %p108, %p109
      %p111 = scmp.ne.s32.totalorder %s100, %s103
      %p112 = scmp.eq.s32.totalorder %s18, 1
      %p113 = por %p111, %p112
      %p114 = scmp.ne.s32.totalorder %s103, %s104
      %p115 = scmp.eq.s32.totalorder %s18, 0
      %p116 = por %p114, %p115
      %p117 = scmp.ne.s32.totalorder %s103, %s104
      %p118 = scmp.eq.s32.totalorder %s19, 1
      %p119 = por %p117, %p118
      %p121 = scmp.ne.s32.totalorder %s104, %s120
      %p122 = scmp.eq.s32.totalorder %s19, 0
      %p123 = por %p121, %p122
      %s124 = ssub.s32 %s22, %s31
      %p125 = scmp.eq.s32.totalorder %s124, 0
      %s127 = sadd.s32 %s126, 1
      %s128 = scalar_select %p125, %s126, %s127
      %p131 = pneg %p125
      %p132 = scmp.eq.s32.totalorder %s13, 1
      %p133 = por %p131, %p132
      %p134 = scmp.ne.s32.totalorder %s126, %s129
      %p135 = scmp.eq.s32.totalorder %s13, 0
      %p136 = por %p134, %p135
      %p137 = scmp.ne.s32.totalorder %s126, %s129
      %p138 = scmp.eq.s32.totalorder %s18, 1
      %p139 = por %p137, %p138
      %p140 = scmp.ne.s32.totalorder %s129, %s130
      %p141 = scmp.eq.s32.totalorder %s18, 0
      %p142 = por %p140, %p141
      %p143 = scmp.ne.s32.totalorder %s129, %s130
      %p144 = scmp.eq.s32.totalorder %s19, 1
      %p145 = por %p143, %p144
      %p147 = scmp.ne.s32.totalorder %s130, %s146
      %p148 = scmp.eq.s32.totalorder %s19, 0
      %p149 = por %p147, %p148
      %s150 = ssub.s32 %s20, %s39
      %s151 = ssub.s32 %s21, %s35
      %s152 = sor.u32 %s150, %s151
      %s153 = ssub.s32 %s22, %s31
      %s154 = sor.u32 %s152, %s153
      %p155 = scmp.eq.s32.totalorder %s154, 0
      %s157 = sadd.s32 %s156, 1
      %s158 = scalar_select %p155, %s156, %s157
      %p161 = pneg %p155
      %p162 = scmp.eq.s32.totalorder %s13, 1
      %p163 = por %p161, %p162
      %p164 = scmp.ne.s32.totalorder %s156, %s159
      %p165 = scmp.eq.s32.totalorder %s13, 0
      %p166 = por %p164, %p165
      %p167 = scmp.ne.s32.totalorder %s156, %s159
      %p168 = scmp.eq.s32.totalorder %s18, 1
      %p169 = por %p167, %p168
      %p170 = scmp.ne.s32.totalorder %s159, %s160
      %p171 = scmp.eq.s32.totalorder %s18, 0
      %p172 = por %p170, %p171
      %p173 = scmp.ne.s32.totalorder %s159, %s160
      %p174 = scmp.eq.s32.totalorder %s19, 1
      %p175 = por %p173, %p174
      %p177 = scmp.ne.s32.totalorder %s160, %s176
      %p178 = scmp.eq.s32.totalorder %s19, 0
      %p179 = por %p177, %p178
      %p180 = scmp.le.s32.totalorder 1, %s13
      %p181 = scmp.lt.s32.totalorder %s13, 3
      %p182 = pnand %p180, %p181
      %p183 = pneg %p182
      // Predicated region
      $region9: #{tpu_custom_call.1} parent=5 // pred_check
        _
      $region10: #{tpu_custom_call.1} parent=5 // pred_check_branch
        %185 = sbr.rel (%p182) target = $region12
      $region11: #{tpu_custom_call.1} parent=5 // pred_region
        %s186 = ssub.s32 %s13, 1
        // Predicated region
        $region13: #{tpu_custom_call.1} parent=11 // pred_check
          %p187 = pneg %p142
        $region14: #{tpu_custom_call.1} parent=11 // pred_check_branch
          %189 = sbr.rel (%p187) target = $region16
        $region15: #{tpu_custom_call.1} parent=11 // pred_region
          %p190 = scmp.lt.s32.totalorder %s25, 0
          %s191 = scalar_select %p190, %s25, 0
          %s192 = scalar_lea.vmem %s3, %s191
        $region16: #{tpu_custom_call.1} parent=11 // pred_fallthru
          _
      $region12: #{tpu_custom_call.1} parent=5 // pred_fallthru
        _
      %p193 = scmp.lt.s32.totalorder %s13, 2
      // Predicated region
      $region17: #{tpu_custom_call.1} parent=5 // pred_check
        %p194 = pneg %p193
      $region18: #{tpu_custom_call.1} parent=5 // pred_check_branch
        %196 = sbr.rel (%p194) target = $region20
      $region19: #{tpu_custom_call.1} parent=5 // pred_region
        // Predicated region
        $region21: #{tpu_custom_call.1} parent=19 // pred_check
          %p197 = pneg %p54
        $region22: #{tpu_custom_call.1} parent=19 // pred_check_branch
          %199 = sbr.rel (%p197) target = $region24
        $region23: #{tpu_custom_call.1} parent=19 // pred_region
          %s200 = smul.u32 16, %s21
          %p201 = scmp.lt.s32.totalorder %s20, 1
          %s202 = scalar_select %p201, %s20, 1
          %p203 = scmp.lt.s32.totalorder %s200, 15
          %s204 = scalar_select %p203, %s200, 15
          %s205 = smul.addr %s202, 16
          %s206 = sadd.s32 %s204, %s205
          %s207 = smul.addr %s206, 8
          %s208 = scalar_lea.vmem %s0, %s207
          %s209 = smul.u32 16, %s21
        $region24: #{tpu_custom_call.1} parent=19 // pred_fallthru
          _
        // Predicated region
        $region25: #{tpu_custom_call.1} parent=19 // pred_check
          %p210 = pneg %p82
        $region26: #{tpu_custom_call.1} parent=19 // pred_check_branch
          %212 = sbr.rel (%p210) target = $region28
        $region27: #{tpu_custom_call.1} parent=19 // pred_region
          %p213 = scmp.lt.s32.totalorder %s20, 1
          %s214 = scalar_select %p213, %s20, 1
          %p215 = scmp.lt.s32.totalorder %s22, 0
          %s216 = scalar_select %p215, %s22, 0
          %s217 = sadd.s32 %s216, %s214
          %s218 = smul.addr %s217, 8
          %s219 = scalar_lea.vmem %s1, %s218
        $region28: #{tpu_custom_call.1} parent=19 // pred_fallthru
          _
        // Predicated region
        $region29: #{tpu_custom_call.1} parent=19 // pred_check
          %p220 = pneg %p110
        $region30: #{tpu_custom_call.1} parent=19 // pred_check_branch
          %222 = sbr.rel (%p220) target = $region32
        $region31: #{tpu_custom_call.1} parent=19 // pred_region
          %p223 = scmp.lt.s32.totalorder %s20, 1
          %s224 = scalar_select %p223, %s20, 1
          %p225 = scmp.lt.s32.totalorder %s22, 0
          %s226 = scalar_select %p225, %s22, 0
          %s227 = sadd.s32 %s226, %s224
          %s228 = scalar_lea.vmem %s2, %s227
        $region32: #{tpu_custom_call.1} parent=19 // pred_fallthru
          _
      $region20: #{tpu_custom_call.1} parent=5 // pred_fallthru
        _
      %p229 = scmp.le.s32.totalorder 1, %s13
      %p230 = scmp.lt.s32.totalorder %s13, 3
      %p231 = pnand %p229, %p230
      %p232 = pneg %p231
      // Predicated region
      $region33: #{tpu_custom_call.1} parent=5 // pred_check
        _
      $region34: #{tpu_custom_call.1} parent=5 // pred_check_branch
        %234 = sbr.rel (%p231) target = $region36
      $region35: #{tpu_custom_call.1} parent=5 // pred_region
        %s235 = ssub.s32 %s13, 1
        %s236 = smul.u32 16, %s24
        %p237 = scmp.lt.s32.totalorder %s23, 1
        %s238 = scalar_select %p237, %s23, 1
        %p239 = scmp.lt.s32.totalorder %s236, 15
        %s240 = scalar_select %p239, %s236, 15
        %s241 = smul.addr %s238, 16
        %s242 = sadd.s32 %s240, %s241
        %s243 = smul.addr %s242, 8
        %s244 = scalar_lea.vmem %s0, %s243
        %p245 = pneg %p60
        %p246 = pneg %p57
        %p247 = scmp.lt.s32.totalorder %s23, 1
        %s248 = scalar_select %p247, %s23, 1
        %p249 = scmp.lt.s32.totalorder %s25, 0
        %s250 = scalar_select %p249, %s25, 0
        %s251 = sadd.s32 %s250, %s248
        %s252 = smul.addr %s251, 8
        %s253 = scalar_lea.vmem %s1, %s252
        %p254 = pneg %p88
        %p255 = pneg %p85
        %p256 = scmp.lt.s32.totalorder %s23, 1
        %s257 = scalar_select %p256, %s23, 1
        %p258 = scmp.lt.s32.totalorder %s25, 0
        %s259 = scalar_select %p258, %s25, 0
        %s260 = sadd.s32 %s259, %s257
        %s261 = scalar_lea.vmem %s2, %s260
        %p262 = pneg %p116
        %p263 = pneg %p113
        %p264 = scmp.lt.s32.totalorder %s25, 0
        %s265 = scalar_select %p264, %s25, 0
        %s266 = scalar_lea.vmem %s3, %s265
        %p267 = pneg %p142
        %p268 = pneg %p139
        %p269 = pneg %p172
        %p270 = pneg %p169
        %s271 = sand.u32 %s159, 1
        %s272 = scalar_lea.sflag [#allocation3], %s271
        %s273 = sand.u32 %s159, 1
        %s274 = smul.addr %s273, 128
        %s275 = scalar_lea.vmem [#allocation2], %s274
        %s276 = smul.u32 16, %s24
        %p277 = scmp.lt.s32.totalorder %s23, 1
        %s278 = scalar_select %p277, %s23, 1
        %p279 = scmp.lt.s32.totalorder %s276, 15
        %s280 = scalar_select %p279, %s276, 15
        %s281 = smul.addr %s278, 16
        %s282 = sadd.s32 %s280, %s281
        %s283 = smul.addr %s282, 8
        %s284 = scalar_lea.vmem %s0, %s283
        %s285 = smul.u32 16, %s24
        %p286 = scmp.lt.s32.totalorder %s23, 1
        %s287 = scalar_select %p286, %s23, 1
        %p288 = scmp.lt.s32.totalorder %s25, 0
        %s289 = scalar_select %p288, %s25, 0
        %s290 = sadd.s32 %s289, %s287
        %s291 = smul.addr %s290, 8
        %s292 = scalar_lea.vmem %s1, %s291
        %p293 = scmp.lt.s32.totalorder %s23, 1
        %s294 = scalar_select %p293, %s23, 1
        %p295 = scmp.lt.s32.totalorder %s25, 0
        %s296 = scalar_select %p295, %s25, 0
        %s297 = sadd.s32 %s296, %s294
        %s298 = scalar_lea.vmem %s2, %s297
        %p299 = scmp.lt.s32.totalorder %s25, 0
        %s300 = scalar_select %p299, %s25, 0
        %s301 = scalar_lea.vmem %s3, %s300
        %s302 = smul.u32 16, %s24
        %v303 = vld [vmem:[%s284] sm:$0xff]
        %v304 = vld [vmem:[%s284 + $0x8] sm:$0xff]
        %v305 = vld [vmem:[%s284 + $0x10] sm:$0xff]
        %v306 = vld [vmem:[%s284 + $0x18] sm:$0xff]
        %v307 = vld [vmem:[%s284 + $0x20] sm:$0xff]
        %v308 = vld [vmem:[%s284 + $0x28] sm:$0xff]
        %v309 = vld [vmem:[%s284 + $0x30] sm:$0xff]
        %v310 = vld [vmem:[%s284 + $0x38] sm:$0xff]
        %v311 = vld [vmem:[%s284 + $0x40] sm:$0xff]
        %v312 = vld [vmem:[%s284 + $0x48] sm:$0xff]
        %v313 = vld [vmem:[%s284 + $0x50] sm:$0xff]
        %v314 = vld [vmem:[%s284 + $0x58] sm:$0xff]
        %v315 = vld [vmem:[%s284 + $0x60] sm:$0xff]
        %v316 = vld [vmem:[%s284 + $0x68] sm:$0xff]
        %v317 = vld [vmem:[%s284 + $0x70] sm:$0xff]
        %v318 = vld [vmem:[%s284 + $0x78] sm:$0xff]
        %v319 = vld [vmem:[%s292] sm:$0xff]
        %vm320 = vcmask 64512
        %v322 = vsel %vm320, %v303, 0
        %v325 = vsel %vm320, %v304, 0
        %v328 = vsel %vm320, %v305, 0
        %v331 = vsel %vm320, %v306, 0
        %v334 = vsel %vm320, %v307, 0
        %v337 = vsel %vm320, %v308, 0
        %v340 = vsel %vm320, %v309, 0
        %v343 = vsel %vm320, %v310, 0
        %v346 = vsel %vm320, %v311, 0
        %v349 = vsel %vm320, %v312, 0
        %v352 = vsel %vm320, %v313, 0
        %v355 = vsel %vm320, %v314, 0
        %v358 = vsel %vm320, %v315, 0
        %v361 = vsel %vm320, %v316, 0
        %v364 = vsel %vm320, %v317, 0
        %v367 = vsel %vm320, %v318, 0
        %369 = vmatprep.subr.mxu0 0.0
        %370 = vmatpush1.msra.mxu0 %v319
        %371 = vmatprep.subr.mxu0 0.0
        %372 = vmatpush1.msra.mxu0 0.0
        %373 = vmatprep.subr.mxu0 0.0
        %374 = vmatpush1.msra.mxu0 0.0
        %375 = vmatprep.subr.mxu0 0.0
        %376 = vmatpush1.msra.mxu0 0.0
        %377 = vmatprep.subr.mxu0 0.0
        %378 = vmatpush1.msra.mxu0 0.0
        %379 = vmatprep.subr.mxu0 0.0
        %380 = vmatpush1.msra.mxu0 0.0
        %381 = vmatprep.subr.mxu0 0.0
        %382 = vmatpush1.msra.mxu0 0.0
        %383 = vmatprep.subr.mxu0 0.0
        %384 = vmatpush1.msra.mxu0 0.0
        %385 = vmatprep.subr.mxu0 0.0
        %386 = vmatpush1.msra.mxu0 0.0
        %387 = vmatprep.subr.mxu0 0.0
        %388 = vmatpush1.msra.mxu0 0.0
        %389 = vmatprep.subr.mxu0 0.0
        %390 = vmatpush1.msra.mxu0 0.0
        %391 = vmatprep.subr.mxu0 0.0
        %392 = vmatpush1.msra.mxu0 0.0
        %393 = vmatprep.subr.mxu0 0.0
        %394 = vmatpush1.msra.mxu0 0.0
        %395 = vmatprep.subr.mxu0 0.0
        %396 = vmatpush1.msra.mxu0 0.0
        %397 = vmatprep.subr.mxu0 0.0
        %398 = vmatpush1.msra.mxu0 0.0
        %399 = vmatprep.subr.mxu0 0.0
        %400 = vmatpush1.msra.mxu0 0.0
        %401 = vmatprep.subr.mxu0 0.0
        %402 = vmatpush1.msra.mxu0 0.0
        %403 = vmatprep.subr.mxu0 0.0
        %404 = vmatpush1.msra.mxu0 0.0
        %405 = vmatprep.subr.mxu0 0.0
        %406 = vmatpush1.msra.mxu0 0.0
        %407 = vmatprep.subr.mxu0 0.0
        %408 = vmatpush1.msra.mxu0 0.0
        %409 = vmatprep.subr.mxu0 0.0
        %410 = vmatpush1.msra.mxu0 0.0
        %411 = vmatprep.subr.mxu0 0.0
        %412 = vmatpush1.msra.mxu0 0.0
        %413 = vmatprep.subr.mxu0 0.0
        %414 = vmatpush1.msra.mxu0 0.0
        %415 = vmatprep.subr.mxu0 0.0
        %416 = vmatpush1.msra.mxu0 0.0
        %417 = vmatprep.subr.mxu0 0.0
        %418 = vmatpush1.msra.mxu0 0.0
        %419 = vmatprep.subr.mxu0 0.0
        %420 = vmatpush1.msra.mxu0 0.0
        %421 = vmatprep.subr.mxu0 0.0
        %422 = vmatpush1.msra.mxu0 0.0
        %423 = vmatprep.subr.mxu0 0.0
        %424 = vmatpush1.msra.mxu0 0.0
        %425 = vmatprep.subr.mxu0 0.0
        %426 = vmatpush1.msra.mxu0 0.0
        %427 = vmatprep.subr.mxu0 0.0
        %428 = vmatpush1.msra.mxu0 0.0
        %429 = vmatprep.subr.mxu0 0.0
        %430 = vmatpush1.msra.mxu0 0.0
        %431 = vmatprep.subr.mxu0 0.0
        %432 = vmatpush1.msra.mxu0 0.0
        %433 = vmatprep.mubr.f32.mxu0 0.0
        %434 = vmatmul.mubr.f32.gmra.mrb[0].mxu0 %v322
        %v435 = vpop.f32.mrb[0].mxu0
        %v436 = vadd.f32 0.0, %v435
        %v437 = vpop.f32.mrb[0].mxu0
        %438 = vmatprep.mubr.f32.mxu0 0.0
        %439 = vmatmul.mubr.f32.gmra.mrb[0].mxu0 %v325
        %v440 = vpop.f32.mrb[0].mxu0
        %v441 = vadd.f32 0.0, %v440
        %v442 = vpop.f32.mrb[0].mxu0
        %443 = vmatprep.mubr.f32.mxu0 0.0
        %444 = vmatmul.mubr.f32.gmra.mrb[0].mxu0 %v328
        %v445 = vpop.f32.mrb[0].mxu0
        %v446 = vadd.f32 0.0, %v445
        %v447 = vpop.f32.mrb[0].mxu0
        %448 = vmatprep.mubr.f32.mxu0 0.0
        %449 = vmatmul.mubr.f32.gmra.mrb[0].mxu0 %v331
        %v450 = vpop.f32.mrb[0].mxu0
        %v451 = vadd.f32 0.0, %v450
        %v452 = vpop.f32.mrb[0].mxu0
        %453 = vmatprep.mubr.f32.mxu0 0.0
        %454 = vmatmul.mubr.f32.gmra.mrb[0].mxu0 %v334
        %v455 = vpop.f32.mrb[0].mxu0
        %v456 = vadd.f32 0.0, %v455
        %v457 = vpop.f32.mrb[0].mxu0
        %458 = vmatprep.mubr.f32.mxu0 0.0
        %459 = vmatmul.mubr.f32.gmra.mrb[0].mxu0 %v337
        %v460 = vpop.f32.mrb[0].mxu0
        %v461 = vadd.f32 0.0, %v460
        %v462 = vpop.f32.mrb[0].mxu0
        %463 = vmatprep.mubr.f32.mxu0 0.0
        %464 = vmatmul.mubr.f32.gmra.mrb[0].mxu0 %v340
        %v465 = vpop.f32.mrb[0].mxu0
        %v466 = vadd.f32 0.0, %v465
        %v467 = vpop.f32.mrb[0].mxu0
        %468 = vmatprep.mubr.f32.mxu0 0.0
        %469 = vmatmul.mubr.f32.gmra.mrb[0].mxu0 %v343
        %v470 = vpop.f32.mrb[0].mxu0
        %v471 = vadd.f32 0.0, %v470
        %v472 = vpop.f32.mrb[0].mxu0
        %473 = vmatprep.mubr.f32.mxu0 0.0
        %474 = vmatmul.mubr.f32.gmra.mrb[0].mxu0 %v346
        %v475 = vpop.f32.mrb[0].mxu0
        %v476 = vadd.f32 0.0, %v475
        %v477 = vpop.f32.mrb[0].mxu0
        %478 = vmatprep.mubr.f32.mxu0 0.0
        %479 = vmatmul.mubr.f32.gmra.mrb[0].mxu0 %v349
        %v480 = vpop.f32.mrb[0].mxu0
        %v481 = vadd.f32 0.0, %v480
        %v482 = vpop.f32.mrb[0].mxu0
        %483 = vmatprep.mubr.f32.mxu0 0.0
        %484 = vmatmul.mubr.f32.gmra.mrb[0].mxu0 %v352
        %v485 = vpop.f32.mrb[0].mxu0
        %v486 = vadd.f32 0.0, %v485
        %v487 = vpop.f32.mrb[0].mxu0
        %488 = vmatprep.mubr.f32.mxu0 0.0
        %489 = vmatmul.mubr.f32.gmra.mrb[0].mxu0 %v355
        %v490 = vpop.f32.mrb[0].mxu0
        %v491 = vadd.f32 0.0, %v490
        %v492 = vpop.f32.mrb[0].mxu0
        %493 = vmatprep.mubr.f32.mxu0 0.0
        %494 = vmatmul.mubr.f32.gmra.mrb[0].mxu0 %v358
        %v495 = vpop.f32.mrb[0].mxu0
        %v496 = vadd.f32 0.0, %v495
        %v497 = vpop.f32.mrb[0].mxu0
        %498 = vmatprep.mubr.f32.mxu0 0.0
        %499 = vmatmul.mubr.f32.gmra.mrb[0].mxu0 %v361
        %v500 = vpop.f32.mrb[0].mxu0
        %v501 = vadd.f32 0.0, %v500
        %v502 = vpop.f32.mrb[0].mxu0
        %503 = vmatprep.mubr.f32.mxu0 0.0
        %504 = vmatmul.mubr.f32.gmra.mrb[0].mxu0 %v364
        %v505 = vpop.f32.mrb[0].mxu0
        %v506 = vadd.f32 0.0, %v505
        %v507 = vpop.f32.mrb[0].mxu0
        %508 = vmatprep.mubr.f32.mxu0 0.0
        %509 = vmatmul.mubr.f32.gmra.mrb[0].mxu0 %v367
        %v510 = vpop.f32.mrb[0].mxu0
        %v511 = vadd.f32 0.0, %v510
        %v512 = vpop.f32.mrb[0].mxu0
        %513 = vdwg.mxu0
        %v514 = vmul.f32 %v303, %v303
        %v515 = vmul.f32 %v304, %v304
        %v516 = vmul.f32 %v305, %v305
        %v517 = vmul.f32 %v306, %v306
        %v518 = vmul.f32 %v307, %v307
        %v519 = vmul.f32 %v308, %v308
        %v520 = vmul.f32 %v309, %v309
        %v521 = vmul.f32 %v310, %v310
        %v522 = vmul.f32 %v311, %v311
        %v523 = vmul.f32 %v312, %v312
        %v524 = vmul.f32 %v313, %v313
        %v525 = vmul.f32 %v314, %v314
        %v526 = vmul.f32 %v315, %v315
        %v527 = vmul.f32 %v316, %v316
        %v528 = vmul.f32 %v317, %v317
        %v529 = vmul.f32 %v318, %v318
        %v530 = vsel %vm320, %v514, 0.0
        %531 = vadd.xlane.f32.xlu0 %v530
        %v532 = vpop.xlane.xlu0 %531
        %v533 = vsel %vm320, %v515, 0.0
        %534 = vadd.xlane.f32.xlu0 %v533
        %v535 = vpop.xlane.xlu0 %534
        %v536 = vsel %vm320, %v516, 0.0
        %537 = vadd.xlane.f32.xlu0 %v536
        %v538 = vpop.xlane.xlu0 %537
        %v539 = vsel %vm320, %v517, 0.0
        %540 = vadd.xlane.f32.xlu0 %v539
        %v541 = vpop.xlane.xlu0 %540
        %v542 = vsel %vm320, %v518, 0.0
        %543 = vadd.xlane.f32.xlu0 %v542
        %v544 = vpop.xlane.xlu0 %543
        %v545 = vsel %vm320, %v519, 0.0
        %546 = vadd.xlane.f32.xlu0 %v545
        %v547 = vpop.xlane.xlu0 %546
        %v548 = vsel %vm320, %v520, 0.0
        %549 = vadd.xlane.f32.xlu0 %v548
        %v550 = vpop.xlane.xlu0 %549
        %v551 = vsel %vm320, %v521, 0.0
        %552 = vadd.xlane.f32.xlu0 %v551
        %v553 = vpop.xlane.xlu0 %552
        %v554 = vsel %vm320, %v522, 0.0
        %555 = vadd.xlane.f32.xlu0 %v554
        %v556 = vpop.xlane.xlu0 %555
        %v557 = vsel %vm320, %v523, 0.0
        %558 = vadd.xlane.f32.xlu0 %v557
        %v559 = vpop.xlane.xlu0 %558
        %v560 = vsel %vm320, %v524, 0.0
        %561 = vadd.xlane.f32.xlu0 %v560
        %v562 = vpop.xlane.xlu0 %561
        %v563 = vsel %vm320, %v525, 0.0
        %564 = vadd.xlane.f32.xlu0 %v563
        %v565 = vpop.xlane.xlu0 %564
        %v566 = vsel %vm320, %v526, 0.0
        %567 = vadd.xlane.f32.xlu0 %v566
        %v568 = vpop.xlane.xlu0 %567
        %v569 = vsel %vm320, %v527, 0.0
        %570 = vadd.xlane.f32.xlu0 %v569
        %v571 = vpop.xlane.xlu0 %570
        %v572 = vsel %vm320, %v528, 0.0
        %573 = vadd.xlane.f32.xlu0 %v572
        %v574 = vpop.xlane.xlu0 %573
        %v575 = vsel %vm320, %v529, 0.0
        %576 = vadd.xlane.f32.xlu0 %v575
        %v577 = vpop.xlane.xlu0 %576
        %v578 = vld [vmem:[%s298] sm:$0x1]
        %v580 = vlaneseq
        %v581 = vshrl.u32 %v580, 7
        %v582 = vsub.s32 0, %v581
        %v583 = vrot.slane %v578, %v582
        %v585 = vadd.f32 %v532, %v583
        %v586 = vadd.f32 %v535, %v583
        %v587 = vadd.f32 %v538, %v583
        %v588 = vadd.f32 %v541, %v583
        %v589 = vadd.f32 %v544, %v583
        %v590 = vadd.f32 %v547, %v583
        %v591 = vadd.f32 %v550, %v583
        %v592 = vadd.f32 %v553, %v583
        %v593 = vadd.f32 %v556, %v583
        %v594 = vadd.f32 %v559, %v583
        %v595 = vadd.f32 %v562, %v583
        %v596 = vadd.f32 %v565, %v583
        %v597 = vadd.f32 %v568, %v583
        %v598 = vadd.f32 %v571, %v583
        %v599 = vadd.f32 %v574, %v583
        %v600 = vadd.f32 %v577, %v583
        %v601 = vmul.f32 %v436, 2.0
        %v602 = vmul.f32 %v441, 2.0
        %v603 = vmul.f32 %v446, 2.0
        %v604 = vmul.f32 %v451, 2.0
        %v605 = vmul.f32 %v456, 2.0
        %v606 = vmul.f32 %v461, 2.0
        %v607 = vmul.f32 %v466, 2.0
        %v608 = vmul.f32 %v471, 2.0
        %v609 = vmul.f32 %v476, 2.0
        %v610 = vmul.f32 %v481, 2.0
        %v611 = vmul.f32 %v486, 2.0
        %v612 = vmul.f32 %v491, 2.0
        %v613 = vmul.f32 %v496, 2.0
        %v614 = vmul.f32 %v501, 2.0
        %v615 = vmul.f32 %v506, 2.0
        %v616 = vmul.f32 %v511, 2.0
        %v617 = vsub.f32 %v585, %v601
        %v618 = vsub.f32 %v586, %v602
        %v619 = vsub.f32 %v587, %v603
        %v620 = vsub.f32 %v588, %v604
        %v621 = vsub.f32 %v589, %v605
        %v622 = vsub.f32 %v590, %v606
        %v623 = vsub.f32 %v591, %v607
        %v624 = vsub.f32 %v592, %v608
        %v625 = vsub.f32 %v593, %v609
        %v626 = vsub.f32 %v594, %v610
        %v627 = vsub.f32 %v595, %v611
        %v628 = vsub.f32 %v596, %v612
        %v629 = vsub.f32 %v597, %v613
        %v630 = vsub.f32 %v598, %v614
        %v631 = vsub.f32 %v599, %v615
        %v632 = vsub.f32 %v600, %v616
        %v633 = vmax.f32 %v617, 0.0
        %v634 = vmax.f32 %v618, 0.0
        %v635 = vmax.f32 %v619, 0.0
        %v636 = vmax.f32 %v620, 0.0
        %v637 = vmax.f32 %v621, 0.0
        %v638 = vmax.f32 %v622, 0.0
        %v639 = vmax.f32 %v623, 0.0
        %v640 = vmax.f32 %v624, 0.0
        %v641 = vmax.f32 %v625, 0.0
        %v642 = vmax.f32 %v626, 0.0
        %v643 = vmax.f32 %v627, 0.0
        %v644 = vmax.f32 %v628, 0.0
        %v645 = vmax.f32 %v629, 0.0
        %v646 = vmax.f32 %v630, 0.0
        %v647 = vmax.f32 %v631, 0.0
        %v648 = vmax.f32 %v632, 0.0
        %v649 = vmul.f32 %v633, -0.49
        %v650 = vmul.f32 %v634, -0.49
        %v651 = vmul.f32 %v635, -0.49
        %v652 = vmul.f32 %v636, -0.49
        %v653 = vmul.f32 %v637, -0.49
        %v654 = vmul.f32 %v638, -0.49
        %v655 = vmul.f32 %v639, -0.49
        %v656 = vmul.f32 %v640, -0.49
        %v657 = vmul.f32 %v641, -0.49
        %v658 = vmul.f32 %v642, -0.49
        %v659 = vmul.f32 %v643, -0.49
        %v660 = vmul.f32 %v644, -0.49
        %v661 = vmul.f32 %v645, -0.49
        %v662 = vmul.f32 %v646, -0.49
        %v663 = vmul.f32 %v647, -0.49
        %v664 = vmul.f32 %v648, -0.49
        %v665 = vmul.f32 %v649, 1.442695
        %v666 = vpow.pop %v665
        %v667 = vmul.f32 %v650, 1.442695
        %v668 = vpow.pop %v667
        %v669 = vmul.f32 %v651, 1.442695
        %v670 = vpow.pop %v669
        %v671 = vmul.f32 %v652, 1.442695
        %v672 = vpow.pop %v671
        %v673 = vmul.f32 %v653, 1.442695
        %v674 = vpow.pop %v673
        %v675 = vmul.f32 %v654, 1.442695
        %v676 = vpow.pop %v675
        %v677 = vmul.f32 %v655, 1.442695
        %v678 = vpow.pop %v677
        %v679 = vmul.f32 %v656, 1.442695
        %v680 = vpow.pop %v679
        %v681 = vmul.f32 %v657, 1.442695
        %v682 = vpow.pop %v681
        %v683 = vmul.f32 %v658, 1.442695
        %v684 = vpow.pop %v683
        %v685 = vmul.f32 %v659, 1.442695
        %v686 = vpow.pop %v685
        %v687 = vmul.f32 %v660, 1.442695
        %v688 = vpow.pop %v687
        %v689 = vmul.f32 %v661, 1.442695
        %v690 = vpow.pop %v689
        %v691 = vmul.f32 %v662, 1.442695
        %v692 = vpow.pop %v691
        %v693 = vmul.f32 %v663, 1.442695
        %v694 = vpow.pop %v693
        %v695 = vmul.f32 %v664, 1.442695
        %v696 = vpow.pop %v695
        %v697 = vld [vmem:[%s301] sm:$0x1]
        %v699 = vlaneseq
        %v700 = vshrl.u32 %v699, 7
        %v701 = vsub.s32 0, %v700
        %v702 = vrot.slane %v697, %v701
        %v704 = vmul.f32 %v666, %v702
        %v705 = vmul.f32 %v668, %v702
        %v706 = vmul.f32 %v670, %v702
        %v707 = vmul.f32 %v672, %v702
        %v708 = vmul.f32 %v674, %v702
        %v709 = vmul.f32 %v676, %v702
        %v710 = vmul.f32 %v678, %v702
        %v711 = vmul.f32 %v680, %v702
        %v712 = vmul.f32 %v682, %v702
        %v713 = vmul.f32 %v684, %v702
        %v714 = vmul.f32 %v686, %v702
        %v715 = vmul.f32 %v688, %v702
        %v716 = vmul.f32 %v690, %v702
        %v717 = vmul.f32 %v692, %v702
        %v718 = vmul.f32 %v694, %v702
        %v719 = vmul.f32 %v696, %v702
        %720 = vst [vmem:[%s275] sm:$0xff] %v704
        %721 = vst [vmem:[%s275 + $0x8] sm:$0xff] %v705
        %722 = vst [vmem:[%s275 + $0x10] sm:$0xff] %v706
        %723 = vst [vmem:[%s275 + $0x18] sm:$0xff] %v707
        %724 = vst [vmem:[%s275 + $0x20] sm:$0xff] %v708
        %725 = vst [vmem:[%s275 + $0x28] sm:$0xff] %v709
        %726 = vst [vmem:[%s275 + $0x30] sm:$0xff] %v710
        %727 = vst [vmem:[%s275 + $0x38] sm:$0xff] %v711
        %728 = vst [vmem:[%s275 + $0x40] sm:$0xff] %v712
        %729 = vst [vmem:[%s275 + $0x48] sm:$0xff] %v713
        %730 = vst [vmem:[%s275 + $0x50] sm:$0xff] %v714
        %731 = vst [vmem:[%s275 + $0x58] sm:$0xff] %v715
        %732 = vst [vmem:[%s275 + $0x60] sm:$0xff] %v716
        %733 = vst [vmem:[%s275 + $0x68] sm:$0xff] %v717
        %734 = vst [vmem:[%s275 + $0x70] sm:$0xff] %v718
        %735 = vst [vmem:[%s275 + $0x78] sm:$0xff] %v719
        %s736 = sand.u32 %s159, 1
        %s737 = scalar_lea.sflag [#allocation3], %s736
        %s738 = sand.u32 %s159, 1
        %s739 = smul.addr %s738, 128
        %s740 = scalar_lea.vmem [#allocation2], %s739
        // Predicated region
        $region37: #{tpu_custom_call.1} parent=35 // pred_check
          %p741 = pneg %p169
        $region38: #{tpu_custom_call.1} parent=35 // pred_check_branch
          %743 = sbr.rel (%p741) target = $region40
        $region39: #{tpu_custom_call.1} parent=35 // pred_region
          %s744 = smul.u32 16, %s24
          %s746 = ssub.s32 2048, 2048
          %747 = vsyncadd %s737, %s746
          %s748 = sadd.s32 %s25, %s744
          %s749 = smul.addr %s23, 16
          %s750 = sadd.s32 %s748, %s749
          %s751 = smul.addr %s750, 128
          %s752 = scalar_lea.hbm %s4, %s751
          %s753 = sshll.u32 %s740, 4
          %s754 = int_to_ptr.vmem [resolvable:$true] %s753
          %759 = dma.vmem_to_hbm [thread:$0]  %s754, 2048, %s752, %s737, 128, 128, 8
        $region40: #{tpu_custom_call.1} parent=35 // pred_fallthru
          _
      $region36: #{tpu_custom_call.1} parent=5 // pred_fallthru
        _
      %p760 = scmp.le.s32.totalorder 2, %s13
      // Predicated region
      $region41: #{tpu_custom_call.1} parent=5 // pred_check
        %p761 = pneg %p760
      $region42: #{tpu_custom_call.1} parent=5 // pred_check_branch
        %763 = sbr.rel (%p761) target = $region44
      $region43: #{tpu_custom_call.1} parent=5 // pred_region
        %s764 = ssub.s32 %s13, 2
        // Predicated region
        $region45: #{tpu_custom_call.1} parent=43 // pred_check
          %p765 = pneg %p175
        $region46: #{tpu_custom_call.1} parent=43 // pred_check_branch
          %767 = sbr.rel (%p765) target = $region48
        $region47: #{tpu_custom_call.1} parent=43 // pred_region
          %s768 = sand.u32 %s160, 1
          %s769 = scalar_lea.sflag [#allocation3], %s768
          %s770 = sand.u32 %s160, 1
          %s771 = smul.addr %s770, 128
          %s772 = scalar_lea.vmem [#allocation2], %s771
          %773 = dma.done %s769, 2048
        $region48: #{tpu_custom_call.1} parent=43 // pred_fallthru
          _
      $region44: #{tpu_custom_call.1} parent=5 // pred_fallthru
        _
    $region6: #{tpu_custom_call.1} parent=1 // loop_footer
      %s17 = sadd.s32 1, %s13
    $region7: #{tpu_custom_call.1} parent=1 // loop_footer_branch
      %12 = sbr.rel target = $region3
    $region8: #{tpu_custom_call.1} parent=1 // loop_exit
      _
    %774 = vsyncpa [#allocation3], 1
    %s775 = scalar_lea.sflag [#allocation3], 1
    %776 = vsyncpa %s775, 1

</llo_original>
